<compile_context>
chip_gen: v5e
topology: v5e:2x2
jax: 0.10.0
libtpu: 0.0.40
codegen_flags: <defaults>
</compile_context>

<pallas_src>
import math

import jax
import jax.numpy as jnp
from jax.experimental import pallas as pl
from jax.experimental.pallas import tpu as pltpu


def _concat_copy_kernel(*refs):
    """refs = (*input_refs, out_ref).

    Each input block is copied into its statically-offset column slice of the
    output block.  Offsets/widths are Python ints (static), so the slices are
    zero-cost views and the stores are plain vector stores.
    """
    out_ref = refs[-1]
    in_refs = refs[:-1]
    off = 0
    for x_ref in in_refs:
        w = x_ref.shape[-1]
        out_ref[:, off:off + w] = x_ref[...].astype(out_ref.dtype)
        off += w


def concat_forward(tensors, dimension=1, tm=512):
    """Concatenate a list of arrays along `dimension` (torch.cat semantics).

    Args:
      tensors:   list of arrays; all dims except `dimension` must match.
      dimension: concat axis (may be negative).
      tm:        row tile (number of collapsed leading-dim rows per grid step).
    Returns:
      Concatenated array, same layout as jnp.concatenate(tensors, dimension).
    """
    tensors = list(tensors)
    assert len(tensors) >= 1
    nd = tensors[0].ndim
    d = dimension % nd

    lead = tensors[0].shape[:d]
    trail = tensors[0].shape[d + 1:]
    for t in tensors:
        assert t.ndim == nd and t.shape[:d] == lead and t.shape[d + 1:] == trail, (
            "all non-concat dims must match")

    out_dtype = jnp.result_type(*[t.dtype for t in tensors])

    P = math.prod(lead) if lead else 1          # collapsed leading rows
    T = math.prod(trail) if trail else 1        # collapsed trailing elems
    widths = [t.shape[d] * T for t in tensors]  # per-input column width
    w_total = sum(widths)

    # Free reshapes: merge contiguous dims only (no data movement).
    flats = [t.reshape(P, w) for t, w in zip(tensors, widths)]

    # Row tile: large for bandwidth, multiple of 8 (or == P) for layout rules.
    tm_eff = min(tm, P)
    grid_rows = pl.cdiv(P, tm_eff)

    in_specs = [pl.BlockSpec((tm_eff, w), lambda r: (r, 0)) for w in widths]
    out_specs = pl.BlockSpec((tm_eff, w_total), lambda r: (r, 0))

    out_flat = pl.pallas_call(
        _concat_copy_kernel,
        out_shape=jax.ShapeDtypeStruct((P, w_total), out_dtype),
        grid_spec=pltpu.PrefetchScalarGridSpec(
            num_scalar_prefetch=0,
            grid=(grid_rows,),
            in_specs=in_specs,
            out_specs=out_specs,
        ),
        compiler_params=pltpu.CompilerParams(
            dimension_semantics=("parallel",)),
    )(*flats)

    out_shape_full = lead + (sum(t.shape[d] for t in tensors),) + trail
    return out_flat.reshape(out_shape_full)


if __name__ == "__main__":
    key = jax.random.PRNGKey(0)
    k1, k2, k3 = jax.random.split(key, 3)

    # Typical YOLO-style usage of Concat: fuse feature maps along channels.
    x1 = jax.random.normal(k1, (2, 4, 16, 16), dtype=jnp.float32)
    x2 = jax.random.normal(k2, (2, 8, 16, 16), dtype=jnp.float32)
    x3 = jax.random.normal(k3, (2, 4, 16, 16), dtype=jnp.float32)
    xs = [x1, x2, x3]

    out = concat_forward(xs, dimension=1)
    jax.block_until_ready(out)
    assert out.shape == (2, 16, 16, 16)

    # Reference: plain JAX concatenate (exact match expected — pure copy).
    ref = jnp.concatenate(xs, axis=1)
    assert jnp.array_equal(out, ref)

    # Also exercise a different concat axis to confirm generality.
    out_last = concat_forward([x1, x3], dimension=-1)
    jax.block_until_ready(out_last)
    assert jnp.array_equal(out_last, jnp.concatenate([x1, x3], axis=-1))

    print("KERNEL_OK")
</pallas_src>

<mosaic_0001>
module attributes {stable_mosaic.version = 11 : i64} {
  func.func @_concat_copy_kernel(%arg0: i32, %arg1: memref<2x1024xf32, #tpu.memory_space<vmem>>, %arg2: memref<2x2048xf32, #tpu.memory_space<vmem>>, %arg3: memref<2x1024xf32, #tpu.memory_space<vmem>>, %arg4: memref<2x4096xf32, #tpu.memory_space<vmem>>) attributes {dimension_semantics = [#tpu.dimension_semantics<parallel>], iteration_bounds = array<i64: 1>, scalar_prefetch = 0 : i64, scratch_operands = 0 : i64, tpu.core_type = #tpu.core_type<tc>, window_params = [{transform_indices = @transform_0, window_bounds = array<i64: 2, 1024>}, {transform_indices = @transform_1, window_bounds = array<i64: 2, 2048>}, {transform_indices = @transform_2, window_bounds = array<i64: 2, 1024>}, {transform_indices = @transform_3, window_bounds = array<i64: 2, 4096>}]} {
    %c0 = arith.constant 0 : index
    %c0_0 = arith.constant 0 : index
    %0 = vector.load %arg1[%c0, %c0_0] : memref<2x1024xf32, #tpu.memory_space<vmem>>, vector<2x1024xf32>
    %c0_1 = arith.constant 0 : index
    %c0_2 = arith.constant 0 : index
    %1 = vector.load %arg4[%c0_1, %c0_2] : memref<2x4096xf32, #tpu.memory_space<vmem>>, vector<2x1024xf32>
    tpu.vector_store %arg4[%c0_1, %c0_2], %0 {strides = array<i32>} : memref<2x4096xf32, #tpu.memory_space<vmem>>, vector<2x1024xf32>,
    %c0_3 = arith.constant 0 : index
    %c0_4 = arith.constant 0 : index
    %2 = vector.load %arg2[%c0_3, %c0_4] : memref<2x2048xf32, #tpu.memory_space<vmem>>, vector<2x2048xf32>
    %c0_5 = arith.constant 0 : index
    %c1024 = arith.constant 1024 : index
    %3 = vector.load %arg4[%c0_5, %c1024] : memref<2x4096xf32, #tpu.memory_space<vmem>>, vector<2x2048xf32>
    tpu.vector_store %arg4[%c0_5, %c1024], %2 {strides = array<i32>} : memref<2x4096xf32, #tpu.memory_space<vmem>>, vector<2x2048xf32>,
    %c0_6 = arith.constant 0 : index
    %c0_7 = arith.constant 0 : index
    %4 = vector.load %arg3[%c0_6, %c0_7] : memref<2x1024xf32, #tpu.memory_space<vmem>>, vector<2x1024xf32>
    %c0_8 = arith.constant 0 : index
    %c3072 = arith.constant 3072 : index
    %5 = vector.load %arg4[%c0_8, %c3072] : memref<2x4096xf32, #tpu.memory_space<vmem>>, vector<2x1024xf32>
    tpu.vector_store %arg4[%c0_8, %c3072], %4 {strides = array<i32>} : memref<2x4096xf32, #tpu.memory_space<vmem>>, vector<2x1024xf32>,
    return
  }
  func.func @transform_0(%arg0: i32) -> (i32, i32) {
    %c0_i32 = arith.constant 0 : i32
    %c0_i32_0 = arith.constant 0 : i32
    return %arg0, %c0_i32 : i32, i32
  }
  func.func @transform_1(%arg0: i32) -> (i32, i32) {
    %c0_i32 = arith.constant 0 : i32
    %c0_i32_0 = arith.constant 0 : i32
    return %arg0, %c0_i32 : i32, i32
  }
  func.func @transform_2(%arg0: i32) -> (i32, i32) {
    %c0_i32 = arith.constant 0 : i32
    %c0_i32_0 = arith.constant 0 : i32
    return %arg0, %c0_i32 : i32, i32
  }
  func.func @transform_3(%arg0: i32) -> (i32, i32) {
    %c0_i32 = arith.constant 0 : i32
    %c0_i32_0 = arith.constant 0 : i32
    return %arg0, %c0_i32 : i32, i32
  }
}

</mosaic_0001>

<llo_original>
// kernel: tpu_custom_call.1
$region0: #{tpu_custom_call.1}
  #allocation0 [shape = 'u32[]', space=smem, size = 0x4, offset = 0x4, fixed_abs, tag = 'smem constant byte address 0x4 - core index']
  #allocation1 [shape = 'u32[72,128]{1,0:T(1,128)}', space=vmem, size = 0x9000, scoped, tag = 'internal scratch']
  %s0 = inlined_call_operand.hbm [shape: f32[2,1024], index: 0, kind: input, shape index: {}]
  %s1 = inlined_call_operand.hbm [shape: f32[2,2048], index: 1, kind: input, shape index: {}]
  %s2 = inlined_call_operand.hbm [shape: f32[2,1024], index: 2, kind: input, shape index: {}]
  %s3 = inlined_call_operand.hbm [shape: f32[2,4096], index: 3, kind: output, shape index: {}]
  %s4 = sld [smem:[#allocation0]]
  $region34: #{tpu_custom_call.1} parent=0
    _
  %s6 = ssub.s32 1, %s4
  %s7 = scalar_select 0, %s6, %s4
  $region1: #{tpu_custom_call.1} parent=0
    #allocation2 [shape = 'u8[8192]{0}', space=vmem, size = 0x2000, scoped, tag = 'input window, operand 0, single buffered']
    #allocation3 [shape = 's32[1]{0}', space=sflag, size = 0x4, scoped, tag = 'scoped memory for tpu_custom_call.1']
    #allocation4 [shape = 's32[1]{0}', space=sflag, size = 0x4, scoped, tag = 'scoped memory for tpu_custom_call.1']
    #allocation5 [shape = 'u8[16384]{0}', space=vmem, size = 0x4000, scoped, tag = 'input window, operand 1, single buffered']
    #allocation6 [shape = 's32[1]{0}', space=sflag, size = 0x4, scoped, tag = 'scoped memory for tpu_custom_call.1']
    #allocation7 [shape = 'u8[8192]{0}', space=vmem, size = 0x2000, scoped, tag = 'input window, operand 2, single buffered']
    #allocation8 [shape = 'u8[32768]{0}', space=vmem, size = 0x8000, scoped, tag = 'output window, operand 0, single buffered']
    %8 = vsyncpa [#allocation3], 0
    %9 = vsyncpa [#allocation6], 0
    %10 = vsyncpa [#allocation4], 0
    // Predicated region
    $region2: #{tpu_custom_call.1} parent=1 // pred_check
      _
    $region3: #{tpu_custom_call.1} parent=1 // pred_check_branch
      %12 = sbr.rel (0) target = $region5
    $region4: #{tpu_custom_call.1} parent=1 // pred_region
      %14 = vsyncadd [#allocation3], 0
      %s16 = sshll.u32 %s0, 4
      %s17 = int_to_ptr.hbm [resolvable:$true] %s16
      %s18 = sshll.u32 [#allocation2], 4
      %s19 = int_to_ptr.vmem [resolvable:$true] %s18
      %21 = dma.hbm_to_vmem [thread:$0]  %s17, 256, %s19, [#allocation3]
    $region5: #{tpu_custom_call.1} parent=1 // pred_fallthru
      _
    // Predicated region
    $region6: #{tpu_custom_call.1} parent=1 // pred_check
      _
    $region7: #{tpu_custom_call.1} parent=1 // pred_check_branch
      %23 = sbr.rel (0) target = $region9
    $region8: #{tpu_custom_call.1} parent=1 // pred_region
      %25 = vsyncadd [#allocation6], 0
      %s27 = sshll.u32 %s1, 4
      %s28 = int_to_ptr.hbm [resolvable:$true] %s27
      %s29 = sshll.u32 [#allocation5], 4
      %s30 = int_to_ptr.vmem [resolvable:$true] %s29
      %32 = dma.hbm_to_vmem [thread:$0]  %s28, 512, %s30, [#allocation6]
    $region9: #{tpu_custom_call.1} parent=1 // pred_fallthru
      _
    // Predicated region
    $region10: #{tpu_custom_call.1} parent=1 // pred_check
      _
    $region11: #{tpu_custom_call.1} parent=1 // pred_check_branch
      %34 = sbr.rel (0) target = $region13
    $region12: #{tpu_custom_call.1} parent=1 // pred_region
      %36 = vsyncadd [#allocation6], 0
      %s38 = sshll.u32 %s2, 4
      %s39 = int_to_ptr.hbm [resolvable:$true] %s38
      %s40 = sshll.u32 [#allocation7], 4
      %s41 = int_to_ptr.vmem [resolvable:$true] %s40
      %43 = dma.hbm_to_vmem [thread:$0]  %s39, 256, %s41, [#allocation6]
    $region13: #{tpu_custom_call.1} parent=1 // pred_fallthru
      _
    // Predicated region
    $region14: #{tpu_custom_call.1} parent=1 // pred_check
      _
    $region15: #{tpu_custom_call.1} parent=1 // pred_check_branch
      %45 = sbr.rel (0) target = $region17
    $region16: #{tpu_custom_call.1} parent=1 // pred_region
      %47 = dma.done [#allocation3], 256
    $region17: #{tpu_custom_call.1} parent=1 // pred_fallthru
      _
    // Predicated region
    $region18: #{tpu_custom_call.1} parent=1 // pred_check
      _
    $region19: #{tpu_custom_call.1} parent=1 // pred_check_branch
      %49 = sbr.rel (0) target = $region21
    $region20: #{tpu_custom_call.1} parent=1 // pred_region
      %51 = dma.done [#allocation6], 512
    $region21: #{tpu_custom_call.1} parent=1 // pred_fallthru
      _
    // Predicated region
    $region22: #{tpu_custom_call.1} parent=1 // pred_check
      _
    $region23: #{tpu_custom_call.1} parent=1 // pred_check_branch
      %53 = sbr.rel (0) target = $region25
    $region24: #{tpu_custom_call.1} parent=1 // pred_region
      %55 = dma.done [#allocation6], 256
    $region25: #{tpu_custom_call.1} parent=1 // pred_fallthru
      _
    %v56 = vld [vmem:[#allocation2] sm:$0xff]
    %v57 = vld [vmem:[#allocation2 + $0x8] sm:$0xff]
    %58 = vst [vmem:[#allocation8] sm:$0xff] %v56
    %59 = vst [vmem:[#allocation8 + $0x8] sm:$0xff] %v57
    %v60 = vld [vmem:[#allocation5] sm:$0xff]
    %v61 = vld [vmem:[#allocation5 + $0x8] sm:$0xff]
    %v62 = vld [vmem:[#allocation5 + $0x10] sm:$0xff]
    %v63 = vld [vmem:[#allocation5 + $0x18] sm:$0xff]
    %64 = vst [vmem:[#allocation8 + $0x10] sm:$0xff] %v60
    %65 = vst [vmem:[#allocation8 + $0x18] sm:$0xff] %v61
    %66 = vst [vmem:[#allocation8 + $0x20] sm:$0xff] %v62
    %67 = vst [vmem:[#allocation8 + $0x28] sm:$0xff] %v63
    %v68 = vld [vmem:[#allocation7] sm:$0xff]
    %v69 = vld [vmem:[#allocation7 + $0x8] sm:$0xff]
    %70 = vst [vmem:[#allocation8 + $0x30] sm:$0xff] %v68
    %71 = vst [vmem:[#allocation8 + $0x38] sm:$0xff] %v69
    // Predicated region
    $region26: #{tpu_custom_call.1} parent=1 // pred_check
      _
    $region27: #{tpu_custom_call.1} parent=1 // pred_check_branch
      %73 = sbr.rel (0) target = $region29
    $region28: #{tpu_custom_call.1} parent=1 // pred_region
      %75 = vsyncadd [#allocation4], 0
      %s77 = sshll.u32 [#allocation8], 4
      %s78 = int_to_ptr.vmem [resolvable:$true] %s77
      %s79 = sshll.u32 %s3, 4
      %s80 = int_to_ptr.hbm [resolvable:$true] %s79
      %82 = dma.vmem_to_hbm [thread:$0]  %s78, 1024, %s80, [#allocation4]
    $region29: #{tpu_custom_call.1} parent=1 // pred_fallthru
      _
    // Predicated region
    $region30: #{tpu_custom_call.1} parent=1 // pred_check
      _
    $region31: #{tpu_custom_call.1} parent=1 // pred_check_branch
      %84 = sbr.rel (0) target = $region33
    $region32: #{tpu_custom_call.1} parent=1 // pred_region
      %86 = dma.done [#allocation4], 1024
    $region33: #{tpu_custom_call.1} parent=1 // pred_fallthru
      _
    %87 = vsyncpa [#allocation3], 1
    %88 = vsyncpa [#allocation6], 1
    %89 = vsyncpa [#allocation4], 1

</llo_original>
